<compile_context>
chip_gen: v7x
topology: tpu7x:2x2x1
jax: 0.10.0
libtpu: 0.0.40
codegen_flags: <defaults>
</compile_context>

<pallas_src>
import jax
import jax.numpy as jnp
from jax import lax
from jax.experimental import pallas as pl
from jax.experimental.pallas import tpu as pltpu


def _round_up(v, m):
    return ((v + m - 1) // m) * m


def _sublane(dtype):
    # Minimum second-minor granule per dtype (f32: 8, bf16: 16, int8/fp8: 32).
    return max(8, 32 // jnp.dtype(dtype).itemsize)


def _pick_tile(dim, align, max_tile):
    """Pick a tile (multiple of `align`, <= max_tile) minimizing the computed/padded
    extent cdiv(dim, tile) * tile.  Tie-break toward the larger tile."""
    rounded = _round_up(max(dim, 1), align)
    hi = max(align, min(max_tile, rounded))
    best_tile, best_pad = align, _round_up(rounded, align)
    t = align
    while t <= hi:
        pad = _round_up(rounded, t)
        if pad < best_pad or (pad == best_pad and t > best_tile):
            best_tile, best_pad = t, pad
        t += align
    return best_tile, best_pad


# --------------------------------------------------------------------------- #
# Fast path: whole weight (and bias) resident in VMEM, grid over M only.
# --------------------------------------------------------------------------- #
def _wres_kernel(x_ref, w_ref, b_ref, o_ref):
    # x_ref: (tm, Fp) activations   w_ref: (O, Fp) full weight (PyTorch layout)
    # b_ref: (1, O)  full bias      o_ref: (tm, O) output tile
    acc = lax.dot_general(
        x_ref[...], w_ref[...],
        dimension_numbers=(((1,), (1,)), ((), ())),   # contract the feature axis
        preferred_element_type=jnp.float32,
    )
    o_ref[...] = (acc + b_ref[...].astype(jnp.float32)).astype(o_ref.dtype)


def _linear_wresident(x, W, b, *, tm_max=256):
    B, F = x.shape
    O = W.shape[0]
    tm, _ = _pick_tile(B, _sublane(x.dtype), tm_max)

    # Pad ONLY the contraction axis, and only to the next lane multiple (128),
    # so the K tail is guaranteed zero.  M edges use partial blocks (masked writes).
    Fp = _round_up(F, 128)
    xp = x if Fp == F else jnp.pad(x, ((0, 0), (0, Fp - F)))
    Wp = W if Fp == F else jnp.pad(W, ((0, 0), (0, Fp - F)))
    b2 = b.reshape(1, O)

    grid = (pl.cdiv(B, tm),)
    return pl.pallas_call(
        _wres_kernel,
        out_shape=jax.ShapeDtypeStruct((B, O), x.dtype),
        grid=grid,
        in_specs=[
            pl.BlockSpec((tm, Fp), lambda i: (i, 0)),   # streamed activation tile
            pl.BlockSpec((O, Fp), lambda i: (0, 0)),    # full weight, stays in VMEM
            pl.BlockSpec((1, O), lambda i: (0, 0)),     # full bias, stays in VMEM
        ],
        out_specs=pl.BlockSpec((tm, O), lambda i: (i, 0)),
        compiler_params=pltpu.CompilerParams(
            # M tiles are independent -> 2-TC sharding on v7x when grid >= 2.
            dimension_semantics=("parallel",),
            vmem_limit_bytes=32 * 1024 * 1024,
        ),
    )(xp, Wp, b2)


# --------------------------------------------------------------------------- #
# General fallback: tiled (M, N, K) matmul with f32 accumulator (big weights).
# --------------------------------------------------------------------------- #
def _mnk_kernel(x_ref, w_ref, b_ref, o_ref, acc_ref):
    # x_ref: (tm, tk)   w_ref: (tn, tk)   b_ref: (1, tn)   o_ref/acc_ref: (tm, tn)
    k = pl.program_id(2)

    @pl.when(k == 0)
    def _():
        acc_ref[...] = jnp.zeros_like(acc_ref)

    acc_ref[...] += lax.dot_general(
        x_ref[...], w_ref[...],
        dimension_numbers=(((1,), (1,)), ((), ())),
        preferred_element_type=jnp.float32,
    )

    @pl.when(k == pl.num_programs(2) - 1)
    def _():
        o_ref[...] = (acc_ref[...] + b_ref[...].astype(jnp.float32)).astype(o_ref.dtype)


def _linear_mnk(x, W, b, *, tm=512, tn=512, tk=1024):
    B, F = x.shape
    O = W.shape[0]
    tm, _ = _pick_tile(B, _sublane(x.dtype), tm)
    tn, _ = _pick_tile(O, 128, tn)
    tk, Fp = _pick_tile(F, 128, tk)        # tk divides Fp by construction

    # Only the contraction axis must be zero-filled (partial K blocks would
    # otherwise feed garbage into the accumulator).  M/N edges: partial blocks.
    xp = x if Fp == F else jnp.pad(x, ((0, 0), (0, Fp - F)))
    Wp = W if Fp == F else jnp.pad(W, ((0, 0), (0, Fp - F)))
    b2 = b.reshape(1, O)

    grid = (pl.cdiv(B, tm), pl.cdiv(O, tn), Fp // tk)
    return pl.pallas_call(
        _mnk_kernel,
        out_shape=jax.ShapeDtypeStruct((B, O), x.dtype),
        grid=grid,
        in_specs=[
            pl.BlockSpec((tm, tk), lambda i, j, k: (i, k)),   # x tile
            pl.BlockSpec((tn, tk), lambda i, j, k: (j, k)),   # W tile (out, in) layout
            pl.BlockSpec((1, tn), lambda i, j, k: (0, j)),    # bias tile
        ],
        out_specs=pl.BlockSpec((tm, tn), lambda i, j, k: (i, j)),
        scratch_shapes=[pltpu.VMEM((tm, tn), jnp.float32)],
        compiler_params=pltpu.CompilerParams(
            dimension_semantics=("parallel", "parallel", "arbitrary"),
            vmem_limit_bytes=32 * 1024 * 1024,
        ),
    )(xp, Wp, b2)


# --------------------------------------------------------------------------- #
# Public forward: y = x @ W.T + b   (x: (..., F), W: (O, F), b: (O,))
# --------------------------------------------------------------------------- #
def net_forward(x, W, b, *, force_general=False):
    orig_shape = x.shape
    F = orig_shape[-1]
    O = W.shape[0]
    assert W.shape == (O, F), f"W shape {W.shape} incompatible with x {orig_shape}"
    assert b.shape == (O,), f"b shape {b.shape} incompatible with W {W.shape}"

    x2d = x.reshape(-1, F)

    # Upper-bound VMEM estimate for the W-resident path (resident W+b, double-
    # buffered x/out tiles).  Fits comfortably under the 32 MiB scoped default
    # on v5e/v6e/v7x for this Net; otherwise fall back to the tiled path.
    itemsize = jnp.dtype(x.dtype).itemsize
    tm_cap = 256
    est = 2 * itemsize * (W.size + O + tm_cap * _round_up(F, 128) + tm_cap * O)

    if force_general or est > 24 * 1024 * 1024:
        y = _linear_mnk(x2d, W, b)
    else:
        y = _linear_wresident(x2d, W, b, tm_max=tm_cap)

    return y.reshape(*orig_shape[:-1], O)


if __name__ == "__main__":
    # 1) Small shapes implied by the module forward (x is (batch, n_feature)).
    batch, n_feature, n_output = 8, 32, 8

    key = jax.random.PRNGKey(0)
    kx, kw, kb = jax.random.split(key, 3)
    x = jax.random.normal(kx, (batch, n_feature), dtype=jnp.float32)
    W = jax.random.normal(kw, (n_output, n_feature), dtype=jnp.float32) * 0.1
    b = jax.random.normal(kb, (n_output,), dtype=jnp.float32) * 0.1

    y = net_forward(x, W, b)
    jax.block_until_ready(y)
    y_ref = x @ W.T + b
    assert jnp.allclose(y, y_ref, atol=1e-5, rtol=1e-5), "mismatch vs reference (small)"

    # 2) Larger, unaligned shapes: exercises the multi-M-tile W-resident path,
    #    the partial edge block (B=300, tm=152) and the F lane-tail padding.
    k2 = jax.random.PRNGKey(1)
    k2x, k2w, k2b = jax.random.split(k2, 3)
    B2, F2, O2 = 300, 1000, 257
    x2 = jax.random.normal(k2x, (B2, F2), dtype=jnp.float32)
    W2 = jax.random.normal(k2w, (O2, F2), dtype=jnp.float32) * 0.05
    b2 = jax.random.normal(k2b, (O2,), dtype=jnp.float32) * 0.05
    y2_ref = x2 @ W2.T + b2

    y2 = net_forward(x2, W2, b2)
    jax.block_until_ready(y2)
    rel2 = float(jnp.max(jnp.abs(y2 - y2_ref)) / (jnp.max(jnp.abs(y2_ref)) + 1e-30))
    assert rel2 < 1e-4, f"mismatch vs reference (large, fast path): rel_err={rel2}"

    # 3) Same shapes through the general (M, N, K) fallback path.
    y3 = net_forward(x2, W2, b2, force_general=True)
    jax.block_until_ready(y3)
    rel3 = float(jnp.max(jnp.abs(y3 - y2_ref)) / (jnp.max(jnp.abs(y2_ref)) + 1e-30))
    assert rel3 < 1e-4, f"mismatch vs reference (large, general path): rel_err={rel3}"

    print("KERNEL_OK")
</pallas_src>

<mosaic_0001>
module attributes {stable_mosaic.version = 11 : i64} {
  func.func @_wres_kernel(%arg0: i32, %arg1: memref<8x128xf32, #tpu.memory_space<vmem>>, %arg2: memref<8x128xf32, #tpu.memory_space<vmem>>, %arg3: memref<1x8xf32, #tpu.memory_space<vmem>>, %arg4: memref<8x8xf32, #tpu.memory_space<vmem>>) attributes {dimension_semantics = [#tpu.dimension_semantics<parallel>], iteration_bounds = array<i64: 1>, scalar_prefetch = 0 : i64, scratch_operands = 0 : i64, tpu.core_type = #tpu.core_type<tc>, window_params = [{transform_indices = @transform_0, window_bounds = array<i64: 8, 128>}, {pipeline_mode = #tpu.pipeline_mode<synchronous>, transform_indices = @transform_1, window_bounds = array<i64: 8, 128>}, {pipeline_mode = #tpu.pipeline_mode<synchronous>, transform_indices = @transform_2, window_bounds = array<i64: 1, 8>}, {transform_indices = @transform_3, window_bounds = array<i64: 8, 8>}]} {
    %c0 = arith.constant 0 : index
    %c0_0 = arith.constant 0 : index
    %0 = vector.load %arg1[%c0, %c0_0] : memref<8x128xf32, #tpu.memory_space<vmem>>, vector<8x128xf32>
    %c0_1 = arith.constant 0 : index
    %c0_2 = arith.constant 0 : index
    %1 = vector.load %arg2[%c0_1, %c0_2] : memref<8x128xf32, #tpu.memory_space<vmem>>, vector<8x128xf32>
    %cst = arith.constant dense<0.000000e+00> : vector<8x8xf32>
    %2 = tpu.matmul %0, %1, %cst {dimension_numbers = #tpu.dot_dimension_numbers<[1], [1], [0], [0], [0, 0, 1, 0], [], []>} : vector<8x128xf32>, vector<8x128xf32>, vector<8x8xf32> -> vector<8x8xf32>
    %c0_3 = arith.constant 0 : index
    %c0_4 = arith.constant 0 : index
    %3 = vector.load %arg3[%c0_3, %c0_4] : memref<1x8xf32, #tpu.memory_space<vmem>>, vector<1x8xf32>
    %4 = vector.broadcast %3 : vector<1x8xf32> to vector<8x8xf32>
    %5 = arith.addf %2, %4 : vector<8x8xf32>
    %c0_5 = arith.constant 0 : index
    %c0_6 = arith.constant 0 : index
    %6 = vector.load %arg4[%c0_5, %c0_6] : memref<8x8xf32, #tpu.memory_space<vmem>>, vector<8x8xf32>
    tpu.vector_store %arg4[%c0_5, %c0_6], %5 {strides = array<i32>} : memref<8x8xf32, #tpu.memory_space<vmem>>, vector<8x8xf32>,
    return
  }
  func.func @transform_0(%arg0: i32) -> (i32, i32) {
    %c0_i32 = arith.constant 0 : i32
    %c0_i32_0 = arith.constant 0 : i32
    return %arg0, %c0_i32 : i32, i32
  }
  func.func @transform_1(%arg0: i32) -> (i32, i32) {
    %c0_i32 = arith.constant 0 : i32
    %c0_i32_0 = arith.constant 0 : i32
    %c0_i32_1 = arith.constant 0 : i32
    return %c0_i32, %c0_i32_0 : i32, i32
  }
  func.func @transform_2(%arg0: i32) -> (i32, i32) {
    %c0_i32 = arith.constant 0 : i32
    %c0_i32_0 = arith.constant 0 : i32
    %c0_i32_1 = arith.constant 0 : i32
    return %c0_i32, %c0_i32_0 : i32, i32
  }
  func.func @transform_3(%arg0: i32) -> (i32, i32) {
    %c0_i32 = arith.constant 0 : i32
    %c0_i32_0 = arith.constant 0 : i32
    return %arg0, %c0_i32 : i32, i32
  }
}

</mosaic_0001>

<llo_original>
// kernel: tpu_custom_call.1
$region0: #{tpu_custom_call.1}
  #allocation0 [shape = 'u32[]', space=smem, size = 0x4, offset = 0x4, fixed_abs, tag = 'smem constant byte address 0x4 - core index']
  #allocation1 [shape = 'u32[144,128]{1,0:T(1,128)}', space=vmem, size = 0x12000, scoped, tag = 'internal scratch']
  %s0 = inlined_call_operand.hbm [shape: f32[8,128], index: 0, kind: input, shape index: {}]
  %s1 = inlined_call_operand.hbm [shape: f32[8,128], index: 1, kind: input, shape index: {}]
  %s2 = inlined_call_operand.vmem [shape: f32[1,8], index: 2, kind: input, shape index: {}]
  %s3 = inlined_call_operand.hbm [shape: f32[8,8], index: 3, kind: output, shape index: {}]
  %s4 = sld [smem:[#allocation0]]
  $region30: #{tpu_custom_call.1} parent=0
    _
  %s6 = ssub.s32 1, %s4
  %s7 = scalar_select 0, %s6, %s4
  $region1: #{tpu_custom_call.1} parent=0
    #allocation2 [shape = 'u8[4096]{0}', space=vmem, size = 0x1000, scoped, tag = 'input window, operand 0, single buffered']
    #allocation3 [shape = 's32[1]{0}', space=sflag, size = 0x4, scoped, tag = 'scoped memory for tpu_custom_call.1']
    #allocation4 [shape = 's32[1]{0}', space=sflag, size = 0x4, scoped, tag = 'scoped memory for tpu_custom_call.1']
    #allocation5 [shape = 'u8[4096]{0}', space=vmem, size = 0x1000, scoped, tag = 'input window, operand 1, single buffered']
    #allocation6 [shape = 's32[1]{0}', space=sflag, size = 0x4, scoped, tag = 'scoped memory for tpu_custom_call.1']
    #allocation7 [shape = 'u8[4096]{0}', space=vmem, size = 0x1000, scoped, tag = 'output window, operand 0, single buffered']
    %8 = vsyncpa [#allocation3], 0
    %9 = vsyncpa [#allocation6], 0
    %10 = vsyncpa [#allocation4], 0
    // Predicated region
    $region2: #{tpu_custom_call.1} parent=1 // pred_check
      _
    $region3: #{tpu_custom_call.1} parent=1 // pred_check_branch
      %12 = sbr.rel (0) target = $region5
    $region4: #{tpu_custom_call.1} parent=1 // pred_region
      %s14 = ssub.s32 128, 128
      %15 = vsyncadd [#allocation3], %s14
      %s17 = sshll.u32 [#allocation2], 4
      %s18 = int_to_ptr.vmem [resolvable:$true] %s17
      %20 = dma.hbm_to_vmem [thread:$0]  %s0, 128, %s18, [#allocation3]
    $region5: #{tpu_custom_call.1} parent=1 // pred_fallthru
      _
    // Predicated region
    $region6: #{tpu_custom_call.1} parent=1 // pred_check
      _
    $region7: #{tpu_custom_call.1} parent=1 // pred_check_branch
      %22 = sbr.rel (0) target = $region9
    $region8: #{tpu_custom_call.1} parent=1 // pred_region
      %s24 = ssub.s32 128, 128
      %25 = vsyncadd [#allocation6], %s24
      %s27 = sshll.u32 [#allocation5], 4
      %s28 = int_to_ptr.vmem [resolvable:$true] %s27
      %30 = dma.hbm_to_vmem [thread:$0]  %s1, 128, %s28, [#allocation6]
    $region9: #{tpu_custom_call.1} parent=1 // pred_fallthru
      _
    // Predicated region
    $region10: #{tpu_custom_call.1} parent=1 // pred_check
      _
    $region11: #{tpu_custom_call.1} parent=1 // pred_check_branch
      %32 = sbr.rel (0) target = $region13
    $region12: #{tpu_custom_call.1} parent=1 // pred_region
      _
    $region13: #{tpu_custom_call.1} parent=1 // pred_fallthru
      _
    // Predicated region
    $region14: #{tpu_custom_call.1} parent=1 // pred_check
      _
    $region15: #{tpu_custom_call.1} parent=1 // pred_check_branch
      %34 = sbr.rel (0) target = $region17
    $region16: #{tpu_custom_call.1} parent=1 // pred_region
      %35 = dma.done [#allocation3], 128
    $region17: #{tpu_custom_call.1} parent=1 // pred_fallthru
      _
    // Predicated region
    $region18: #{tpu_custom_call.1} parent=1 // pred_check
      _
    $region19: #{tpu_custom_call.1} parent=1 // pred_check_branch
      %37 = sbr.rel (0) target = $region21
    $region20: #{tpu_custom_call.1} parent=1 // pred_region
      %38 = dma.done [#allocation6], 128
    $region21: #{tpu_custom_call.1} parent=1 // pred_fallthru
      _
    %v39 = vld [vmem:[#allocation2] sm:$0xff]
    %v40 = vld [vmem:[#allocation5] sm:$0xff]
    %v41 = vld [vmem:[%s2] sm:$0x1]
    %v43 = vlaneseq
    %v44 = vshrl.u32 %v43, 7
    %v45 = vsub.s32 0, %v44
    %v46 = vrot.slane %v41, %v45
    %48 = vmatprep.subr.mxu0 0.0
    %49 = vmatpush1.xpose.msra.mxu0 %v40
    %50 = vmatprep.subr.mxu0 0.0
    %51 = vmatpush1.xpose.msra.mxu0 0.0
    %52 = vmatprep.subr.mxu0 0.0
    %53 = vmatpush1.xpose.msra.mxu0 0.0
    %54 = vmatprep.subr.mxu0 0.0
    %55 = vmatpush1.xpose.msra.mxu0 0.0
    %56 = vmatprep.subr.mxu0 0.0
    %57 = vmatpush1.xpose.msra.mxu0 0.0
    %58 = vmatprep.subr.mxu0 0.0
    %59 = vmatpush1.xpose.msra.mxu0 0.0
    %60 = vmatprep.subr.mxu0 0.0
    %61 = vmatpush1.xpose.msra.mxu0 0.0
    %62 = vmatprep.subr.mxu0 0.0
    %63 = vmatpush1.xpose.msra.mxu0 0.0
    %64 = vmatprep.subr.mxu0 0.0
    %65 = vmatpush1.xpose.msra.mxu0 0.0
    %66 = vmatprep.subr.mxu0 0.0
    %67 = vmatpush1.xpose.msra.mxu0 0.0
    %68 = vmatprep.subr.mxu0 0.0
    %69 = vmatpush1.xpose.msra.mxu0 0.0
    %70 = vmatprep.subr.mxu0 0.0
    %71 = vmatpush1.xpose.msra.mxu0 0.0
    %72 = vmatprep.subr.mxu0 0.0
    %73 = vmatpush1.xpose.msra.mxu0 0.0
    %74 = vmatprep.subr.mxu0 0.0
    %75 = vmatpush1.xpose.msra.mxu0 0.0
    %76 = vmatprep.subr.mxu0 0.0
    %77 = vmatpush1.xpose.msra.mxu0 0.0
    %78 = vmatprep.subr.mxu0 0.0
    %79 = vmatpush1.xpose.msra.mxu0 0.0
    %80 = vmatprep.subr.mxu0 0.0
    %81 = vmatpush1.xpose.msra.mxu0 0.0
    %82 = vmatprep.subr.mxu0 0.0
    %83 = vmatpush1.xpose.msra.mxu0 0.0
    %84 = vmatprep.subr.mxu0 0.0
    %85 = vmatpush1.xpose.msra.mxu0 0.0
    %86 = vmatprep.subr.mxu0 0.0
    %87 = vmatpush1.xpose.msra.mxu0 0.0
    %88 = vmatprep.subr.mxu0 0.0
    %89 = vmatpush1.xpose.msra.mxu0 0.0
    %90 = vmatprep.subr.mxu0 0.0
    %91 = vmatpush1.xpose.msra.mxu0 0.0
    %92 = vmatprep.subr.mxu0 0.0
    %93 = vmatpush1.xpose.msra.mxu0 0.0
    %94 = vmatprep.subr.mxu0 0.0
    %95 = vmatpush1.xpose.msra.mxu0 0.0
    %96 = vmatprep.subr.mxu0 0.0
    %97 = vmatpush1.xpose.msra.mxu0 0.0
    %98 = vmatprep.subr.mxu0 0.0
    %99 = vmatpush1.xpose.msra.mxu0 0.0
    %100 = vmatprep.subr.mxu0 0.0
    %101 = vmatpush1.xpose.msra.mxu0 0.0
    %102 = vmatprep.subr.mxu0 0.0
    %103 = vmatpush1.xpose.msra.mxu0 0.0
    %104 = vmatprep.subr.mxu0 0.0
    %105 = vmatpush1.xpose.msra.mxu0 0.0
    %106 = vmatprep.subr.mxu0 0.0
    %107 = vmatpush1.xpose.msra.mxu0 0.0
    %108 = vmatprep.subr.mxu0 0.0
    %109 = vmatpush1.xpose.msra.mxu0 0.0
    %110 = vmatprep.subr.mxu0 0.0
    %111 = vmatpush1.xpose.msra.mxu0 0.0
    %112 = vmatprep.mubr.f32.mxu0 0.0
    %113 = vmatmul.mubr.f32.gmra.mrb[0].mxu0 %v39
    %v114 = vpop.f32.mrb[0].mxu0
    %v115 = vadd.f32 %v46, %v114
    %v116 = vpop.f32.mrb[0].mxu0
    %117 = vdwg.mxu0
    %vm118 = vcmask 64512
    %119 = vst.msk [vmem:[#allocation7] sm:$0xff] %vm118, %v115
    // Predicated region
    $region22: #{tpu_custom_call.1} parent=1 // pred_check
      _
    $region23: #{tpu_custom_call.1} parent=1 // pred_check_branch
      %121 = sbr.rel (0) target = $region25
    $region24: #{tpu_custom_call.1} parent=1 // pred_region
      %s123 = ssub.s32 128, 128
      %124 = vsyncadd [#allocation4], %s123
      %s126 = sshll.u32 [#allocation7], 4
      %s127 = int_to_ptr.vmem [resolvable:$true] %s126
      %129 = dma.vmem_to_hbm [thread:$0]  %s127, 128, %s3, [#allocation4]
    $region25: #{tpu_custom_call.1} parent=1 // pred_fallthru
      _
    // Predicated region
    $region26: #{tpu_custom_call.1} parent=1 // pred_check
      _
    $region27: #{tpu_custom_call.1} parent=1 // pred_check_branch
      %131 = sbr.rel (0) target = $region29
    $region28: #{tpu_custom_call.1} parent=1 // pred_region
      %132 = dma.done [#allocation4], 128
    $region29: #{tpu_custom_call.1} parent=1 // pred_fallthru
      _
    %133 = vsyncpa [#allocation3], 1
    %134 = vsyncpa [#allocation6], 1
    %135 = vsyncpa [#allocation4], 1

</llo_original>
